<compile_context>
chip_gen: v7x
topology: tpu7x:2x2x1
jax: 0.10.0
libtpu: 0.0.40
codegen_flags: <defaults>
</compile_context>

<pallas_src>
import functools

import jax
import jax.numpy as jnp
from jax.experimental import pallas as pl
from jax.experimental.pallas import tpu as pltpu


def _round_up(x, m):
    return (x + m - 1) // m * m


def _fcn_kernel(cfg, x_ref, w_ref, o_ref):
    """One batch tile of the whole MLP, fully in VMEM.

    `cfg` holds static Python ints: padded layer width D, the row offsets of
    each layer inside the single packed weight buffer, etc.  All weight
    slices below are static, 8-row aligned and full 128-lane wide.
    """
    n_input = cfg["n_input"]
    D = cfg["d_pad"]              # padded hidden width (multiple of 128)
    n_store = cfg["n_store"]      # 3 * n_output (real output lanes)

    x = x_ref[...]                                            # (bb, n_input)

    # ---- Input layer: Linear(n_input, H) + tanh --------------------------
    o = cfg["off_w0"]
    w0 = w_ref[o:o + n_input, :]                              # (n_input, D)
    o = cfg["off_b0"]
    b0 = w_ref[o:o + 1, :]                                    # (1, D)
    if n_input == 1:
        # K=1 contraction == broadcast multiply; skip the degenerate MXU pass.
        h = x * w0 + b0
    else:
        h = jnp.dot(x, w0, preferred_element_type=jnp.float32) + b0
    h = jnp.tanh(h)                                           # (bb, D)

    # ---- Hidden stack: (N_LAYERS-1) x [Linear(H, H) + tanh], unrolled ----
    # Weight slabs are (D, D) with zero padding -> padded lanes of h stay 0.
    for ow, ob in zip(cfg["off_wh"], cfg["off_bh"]):
        wl = w_ref[ow:ow + D, :]                              # (D, D)
        bl = w_ref[ob:ob + 1, :]                              # (1, D)
        h = jnp.tanh(jnp.dot(h, wl, preferred_element_type=jnp.float32) + bl)

    # ---- Fused output heads: one (D, D) matmul, store only real lanes ----
    o = cfg["off_whead"]
    w_head = w_ref[o:o + D, :]                                # (D, D)
    o = cfg["off_bhead"]
    b_head = w_ref[o:o + 1, :]                                # (1, D)
    y = jnp.dot(h, w_head, preferred_element_type=jnp.float32) + b_head
    o_ref[...] = y[:, :n_store]                               # (bb, 3*n_out)


def pack_fcn_params(params):
    """Pack the whole network into one contiguous (R, D) f32 buffer.

    D = max(round_up(H, 128), round_up(3*n_output, 128)) so every section is
    a full-lane slab; hidden / head weights are also padded to D rows so the
    kernel's D-row static slices are tile-aligned and read exact zeros in the
    padding.  Every section starts on an 8-row boundary.
    The three heads (S, I, R) are concatenated column-wise into one slab.
    Returns (packed_array, cfg) where cfg contains only static Python ints.
    """
    w0, b0 = params["w0"], params["b0"]
    wh, bh = params["wh"], params["bh"]
    n_input, H = int(w0.shape[0]), int(w0.shape[1])
    n_output = int(params["ws"].shape[1])
    n_hidden_layers = int(wh.shape[0])

    D = max(_round_up(H, 128), _round_up(3 * n_output, 128))

    sections = []
    offsets = {}
    row = 0

    def put(name, arr, min_rows=0):
        nonlocal row
        r, c = int(arr.shape[0]), int(arr.shape[1])
        r_pad = _round_up(max(r, min_rows), 8)
        blk = jnp.zeros((r_pad, D), jnp.float32).at[:r, :c].set(
            arr.astype(jnp.float32))
        sections.append(blk)
        offsets[name] = row
        row += r_pad

    put("w0", w0)
    put("b0", b0)
    off_wh, off_bh = [], []
    for l in range(n_hidden_layers):          # handles n_layers == 1 (empty)
        put(f"wh{l}", wh[l], min_rows=D)      # (D, D) slab
        off_wh.append(offsets[f"wh{l}"])
        put(f"bh{l}", bh[l])
        off_bh.append(offsets[f"bh{l}"])

    w_head = jnp.concatenate([params["ws"], params["wi"], params["wr"]], axis=1)
    b_head = jnp.concatenate([params["bs"], params["bi"], params["br"]], axis=1)
    put("whead", w_head, min_rows=D)          # (D, D) slab
    put("bhead", b_head)

    packed = jnp.concatenate(sections, axis=0)                # (R, D)

    cfg = dict(
        n_input=n_input, n_hidden=H, n_output=n_output,
        d_pad=D, n_store=3 * n_output,
        off_w0=offsets["w0"], off_b0=offsets["b0"],
        off_wh=tuple(off_wh), off_bh=tuple(off_bh),
        off_whead=offsets["whead"], off_bhead=offsets["bhead"],
    )
    return packed, cfg


def fcn_forward(x, packed, cfg, *, block_b=4096, max_block_b=8192,
                vmem_limit_bytes=64 * 1024 * 1024):
    """Gridded forward pass.

    Batch tiling:
      * bb = round_up(cdiv(B, n_steps), 8) -> padding waste < 8 rows/step.
      * bb capped at `max_block_b` (8192) so the double-buffered lane-padded
        input/output tiles fit v7x's 64 MiB VMEM.
      * at least 2 grid steps for large batches so v7x's two TensorCores both
        get work (grid axis marked "parallel"; no-op on v5e/v6e).
    The packed weight buffer maps to block (0, 0) every step -> stays
    VMEM-resident across the whole grid.
    """
    B, n_input = x.shape
    assert n_input == cfg["n_input"]
    n_output = cfg["n_output"]
    n_store = cfg["n_store"]

    # --- choose block size / step count ------------------------------------
    n_steps = max(1, pl.cdiv(B, block_b))
    if n_steps == 1 and B >= 1024:
        n_steps = 2                               # let v7x megacore split it
    bb = _round_up(pl.cdiv(B, n_steps), 8)
    if bb > max_block_b:                          # respect v7x VMEM budget
        bb = _round_up(max_block_b, 8)
        n_steps = pl.cdiv(B, bb)
        bb = _round_up(pl.cdiv(B, n_steps), 8)    # rebalance -> small padding
    B_pad = bb * n_steps
    if B_pad != B:
        x = jnp.pad(x, ((0, B_pad - B), (0, 0)))
    grid = (n_steps,)

    kernel = functools.partial(_fcn_kernel, cfg)

    # Advisory cost estimate for XLA's scheduler.
    D = cfg["d_pad"]
    n_hl = len(cfg["off_wh"])
    cost = pl.CostEstimate(
        flops=2 * B_pad * D * (1 + (n_hl + 1) * D),
        transcendentals=B_pad * D * (1 + n_hl),
        bytes_accessed=4 * (B_pad * n_input + int(packed.size)
                            + B_pad * n_store),
    )

    out = pl.pallas_call(
        kernel,
        out_shape=jax.ShapeDtypeStruct((B_pad, n_store), jnp.float32),
        grid_spec=pltpu.PrefetchScalarGridSpec(
            num_scalar_prefetch=0,
            grid=grid,
            in_specs=[
                pl.BlockSpec((bb, n_input), lambda i: (i, 0)),
                # whole packed net; same block every step -> VMEM-resident
                pl.BlockSpec(packed.shape, lambda i: (0, 0)),
            ],
            out_specs=pl.BlockSpec((bb, n_store), lambda i: (i, 0)),
        ),
        compiler_params=pltpu.CompilerParams(
            dimension_semantics=("parallel",),
            vmem_limit_bytes=vmem_limit_bytes,
        ),
        cost_estimate=cost,
    )(x, packed)

    out = out[:B]
    s = out[:, 0:n_output]
    i = out[:, n_output:2 * n_output]
    r = out[:, 2 * n_output:3 * n_output]
    return s, i, r


def init_fcn_params(key, n_input, n_output, n_hidden, n_layers):
    """Deterministic init mirroring PyTorch nn.Linear defaults:
    U(-1/sqrt(fan_in), 1/sqrt(fan_in)) for both weights and biases."""
    def linear(key, fan_in, fan_out):
        kw, kb = jax.random.split(key)
        bound = 1.0 / jnp.sqrt(jnp.float32(fan_in))
        w = jax.random.uniform(kw, (fan_in, fan_out), jnp.float32, -bound, bound)
        b = jax.random.uniform(kb, (1, fan_out), jnp.float32, -bound, bound)
        return w, b

    keys = jax.random.split(key, n_layers + 3)
    w0, b0 = linear(keys[0], n_input, n_hidden)

    wh_list, bh_list = [], []
    for l in range(n_layers - 1):
        w, b = linear(keys[1 + l], n_hidden, n_hidden)
        wh_list.append(w)
        bh_list.append(b)
    if n_layers - 1 > 0:
        wh = jnp.stack(wh_list)                      # (L-1, H, H)
        bh = jnp.stack(bh_list)                      # (L-1, 1, H)
    else:
        wh = jnp.zeros((0, n_hidden, n_hidden), jnp.float32)
        bh = jnp.zeros((0, 1, n_hidden), jnp.float32)

    ws, bs = linear(keys[n_layers], n_hidden, n_output)
    wi, bi = linear(keys[n_layers + 1], n_hidden, n_output)
    wr, br = linear(keys[n_layers + 2], n_hidden, n_output)

    return {"w0": w0, "b0": b0, "wh": wh, "bh": bh,
            "ws": ws, "bs": bs, "wi": wi, "bi": bi, "wr": wr, "br": br}


def fcn_reference(x, params):
    """Pure-JAX reference of the same forward pass."""
    h = jnp.tanh(x @ params["w0"] + params["b0"])
    for l in range(params["wh"].shape[0]):
        h = jnp.tanh(h @ params["wh"][l] + params["bh"][l])
    return (h @ params["ws"] + params["bs"],
            h @ params["wi"] + params["bi"],
            h @ params["wr"] + params["br"])


if __name__ == "__main__":
    # SIR PINN configuration: scalar time input, scalar output per head.
    N_INPUT, N_OUTPUT, N_HIDDEN, N_LAYERS = 1, 1, 32, 3
    BATCH = 8

    key = jax.random.PRNGKey(0)
    k_params, k_x = jax.random.split(key)

    params = init_fcn_params(k_params, N_INPUT, N_OUTPUT, N_HIDDEN, N_LAYERS)
    packed, cfg = pack_fcn_params(params)

    # --- small-shape check (single grid step) ------------------------------
    x = jax.random.uniform(k_x, (BATCH, N_INPUT), jnp.float32)
    s_out, i_out, r_out = fcn_forward(x, packed, cfg)
    jax.block_until_ready((s_out, i_out, r_out))

    s_ref, i_ref, r_ref = fcn_reference(x, params)
    assert jnp.allclose(s_out, s_ref, atol=1e-5)
    assert jnp.allclose(i_out, i_ref, atol=1e-5)
    assert jnp.allclose(r_out, r_ref, atol=1e-5)

    # --- multi-step grid + batch-padding check ------------------------------
    x2 = jax.random.uniform(jax.random.PRNGKey(1), (2500, N_INPUT), jnp.float32)
    s2, i2, r2 = fcn_forward(x2, packed, cfg, block_b=1024)
    jax.block_until_ready((s2, i2, r2))
    s2r, i2r, r2r = fcn_reference(x2, params)
    assert jnp.allclose(s2, s2r, atol=1e-5)
    assert jnp.allclose(i2, i2r, atol=1e-5)
    assert jnp.allclose(r2, r2r, atol=1e-5)

    print("KERNEL_OK")
</pallas_src>

<mosaic_0001>
module attributes {stable_mosaic.version = 11 : i64} {
  func.func @_fcn_kernel(%arg0: i32, %arg1: memref<8x1xf32, #tpu.memory_space<vmem>>, %arg2: memref<424x128xf32, #tpu.memory_space<vmem>>, %arg3: memref<8x3xf32, #tpu.memory_space<vmem>>) attributes {dimension_semantics = [#tpu.dimension_semantics<parallel>], iteration_bounds = array<i64: 1>, scalar_prefetch = 0 : i64, scratch_operands = 0 : i64, tpu.core_type = #tpu.core_type<tc>, window_params = [{transform_indices = @transform_0, window_bounds = array<i64: 8, 1>}, {pipeline_mode = #tpu.pipeline_mode<synchronous>, transform_indices = @transform_1, window_bounds = array<i64: 424, 128>}, {transform_indices = @transform_2, window_bounds = array<i64: 8, 3>}]} {
    %c0 = arith.constant 0 : index
    %c0_0 = arith.constant 0 : index
    %0 = vector.load %arg1[%c0, %c0_0] : memref<8x1xf32, #tpu.memory_space<vmem>>, vector<8x1xf32>
    %c0_1 = arith.constant 0 : index
    %c0_2 = arith.constant 0 : index
    %1 = vector.load %arg2[%c0_1, %c0_2] : memref<424x128xf32, #tpu.memory_space<vmem>>, vector<1x128xf32>
    %c8 = arith.constant 8 : index
    %c0_3 = arith.constant 0 : index
    %2 = vector.load %arg2[%c8, %c0_3] : memref<424x128xf32, #tpu.memory_space<vmem>>, vector<1x128xf32>
    %3 = vector.broadcast %0 : vector<8x1xf32> to vector<8x128xf32>
    %4 = vector.broadcast %1 : vector<1x128xf32> to vector<8x128xf32>
    %5 = arith.mulf %3, %4 : vector<8x128xf32>
    %6 = vector.broadcast %2 : vector<1x128xf32> to vector<8x128xf32>
    %7 = arith.addf %5, %6 : vector<8x128xf32>
    %8 = math.tanh %7 : vector<8x128xf32>
    %c16 = arith.constant 16 : index
    %c0_4 = arith.constant 0 : index
    %9 = vector.load %arg2[%c16, %c0_4] : memref<424x128xf32, #tpu.memory_space<vmem>>, vector<128x128xf32>
    %c144 = arith.constant 144 : index
    %c0_5 = arith.constant 0 : index
    %10 = vector.load %arg2[%c144, %c0_5] : memref<424x128xf32, #tpu.memory_space<vmem>>, vector<1x128xf32>
    %cst = arith.constant dense<0.000000e+00> : vector<8x128xf32>
    %11 = tpu.matmul %8, %9, %cst {dimension_numbers = #tpu.dot_dimension_numbers<[1], [0], [0], [1], [0, 0, 1, 1], [], []>} : vector<8x128xf32>, vector<128x128xf32>, vector<8x128xf32> -> vector<8x128xf32>
    %12 = vector.broadcast %10 : vector<1x128xf32> to vector<8x128xf32>
    %13 = arith.addf %11, %12 : vector<8x128xf32>
    %14 = math.tanh %13 : vector<8x128xf32>
    %c152 = arith.constant 152 : index
    %c0_6 = arith.constant 0 : index
    %15 = vector.load %arg2[%c152, %c0_6] : memref<424x128xf32, #tpu.memory_space<vmem>>, vector<128x128xf32>
    %c280 = arith.constant 280 : index
    %c0_7 = arith.constant 0 : index
    %16 = vector.load %arg2[%c280, %c0_7] : memref<424x128xf32, #tpu.memory_space<vmem>>, vector<1x128xf32>
    %cst_8 = arith.constant dense<0.000000e+00> : vector<8x128xf32>
    %17 = tpu.matmul %14, %15, %cst_8 {dimension_numbers = #tpu.dot_dimension_numbers<[1], [0], [0], [1], [0, 0, 1, 1], [], []>} : vector<8x128xf32>, vector<128x128xf32>, vector<8x128xf32> -> vector<8x128xf32>
    %18 = vector.broadcast %16 : vector<1x128xf32> to vector<8x128xf32>
    %19 = arith.addf %17, %18 : vector<8x128xf32>
    %20 = math.tanh %19 : vector<8x128xf32>
    %c288 = arith.constant 288 : index
    %c0_9 = arith.constant 0 : index
    %21 = vector.load %arg2[%c288, %c0_9] : memref<424x128xf32, #tpu.memory_space<vmem>>, vector<128x128xf32>
    %c416 = arith.constant 416 : index
    %c0_10 = arith.constant 0 : index
    %22 = vector.load %arg2[%c416, %c0_10] : memref<424x128xf32, #tpu.memory_space<vmem>>, vector<1x128xf32>
    %cst_11 = arith.constant dense<0.000000e+00> : vector<8x128xf32>
    %23 = tpu.matmul %20, %21, %cst_11 {dimension_numbers = #tpu.dot_dimension_numbers<[1], [0], [0], [1], [0, 0, 1, 1], [], []>} : vector<8x128xf32>, vector<128x128xf32>, vector<8x128xf32> -> vector<8x128xf32>
    %24 = vector.broadcast %22 : vector<1x128xf32> to vector<8x128xf32>
    %25 = arith.addf %23, %24 : vector<8x128xf32>
    %26 = vector.extract_strided_slice %25 {offsets = [0, 0], sizes = [8, 3], strides = [1, 1]} : vector<8x128xf32> to vector<8x3xf32>
    %c0_12 = arith.constant 0 : index
    %c0_13 = arith.constant 0 : index
    %27 = vector.load %arg3[%c0_12, %c0_13] : memref<8x3xf32, #tpu.memory_space<vmem>>, vector<8x3xf32>
    tpu.vector_store %arg3[%c0_12, %c0_13], %26 {strides = array<i32>} : memref<8x3xf32, #tpu.memory_space<vmem>>, vector<8x3xf32>,
    return
  }
  func.func @transform_0(%arg0: i32) -> (i32, i32) {
    %c0_i32 = arith.constant 0 : i32
    %c0_i32_0 = arith.constant 0 : i32
    return %arg0, %c0_i32 : i32, i32
  }
  func.func @transform_1(%arg0: i32) -> (i32, i32) {
    %c0_i32 = arith.constant 0 : i32
    %c0_i32_0 = arith.constant 0 : i32
    %c0_i32_1 = arith.constant 0 : i32
    return %c0_i32, %c0_i32_0 : i32, i32
  }
  func.func @transform_2(%arg0: i32) -> (i32, i32) {
    %c0_i32 = arith.constant 0 : i32
    %c0_i32_0 = arith.constant 0 : i32
    return %arg0, %c0_i32 : i32, i32
  }
}

</mosaic_0001>

<llo_original>
// kernel: tpu_custom_call.1
$region0: #{tpu_custom_call.1}
  #allocation0 [shape = 'u32[]', space=smem, size = 0x4, offset = 0x4, fixed_abs, tag = 'smem constant byte address 0x4 - core index']
  #allocation1 [shape = 'u32[144,128]{1,0:T(1,128)}', space=vmem, size = 0x12000, scoped, tag = 'internal scratch']
  %s0 = inlined_call_operand.hbm [shape: f32[8,1], index: 0, kind: input, shape index: {}]
  %s1 = inlined_call_operand.hbm [shape: f32[424,128], index: 1, kind: input, shape index: {}]
  %s2 = inlined_call_operand.hbm [shape: f32[8,3], index: 2, kind: output, shape index: {}]
  %s3 = sld [smem:[#allocation0]]
  $region26: #{tpu_custom_call.1} parent=0
    _
  %s5 = ssub.s32 1, %s3
  %s6 = scalar_select 0, %s5, %s3
  $region1: #{tpu_custom_call.1} parent=0
    #allocation2 [shape = 'u8[4096]{0}', space=vmem, size = 0x1000, scoped, tag = 'input window, operand 0, single buffered']
    #allocation3 [shape = 's32[1]{0}', space=sflag, size = 0x4, scoped, tag = 'scoped memory for tpu_custom_call.1']
    #allocation4 [shape = 's32[1]{0}', space=sflag, size = 0x4, scoped, tag = 'scoped memory for tpu_custom_call.1']
    #allocation5 [shape = 'u8[217088]{0}', space=vmem, size = 0x35000, scoped, tag = 'input window, operand 1, single buffered']
    #allocation6 [shape = 's32[1]{0}', space=sflag, size = 0x4, scoped, tag = 'scoped memory for tpu_custom_call.1']
    #allocation7 [shape = 'u8[4096]{0}', space=vmem, size = 0x1000, scoped, tag = 'output window, operand 0, single buffered']
    %7 = vsyncpa [#allocation3], 0
    %8 = vsyncpa [#allocation6], 0
    %9 = vsyncpa [#allocation4], 0
    // Predicated region
    $region2: #{tpu_custom_call.1} parent=1 // pred_check
      _
    $region3: #{tpu_custom_call.1} parent=1 // pred_check_branch
      %11 = sbr.rel (0) target = $region5
    $region4: #{tpu_custom_call.1} parent=1 // pred_region
      %s13 = ssub.s32 128, 128
      %14 = vsyncadd [#allocation3], %s13
      %s16 = sshll.u32 [#allocation2], 4
      %s17 = int_to_ptr.vmem [resolvable:$true] %s16
      %19 = dma.hbm_to_vmem [thread:$0]  %s0, 128, %s17, [#allocation3]
    $region5: #{tpu_custom_call.1} parent=1 // pred_fallthru
      _
    // Predicated region
    $region6: #{tpu_custom_call.1} parent=1 // pred_check
      _
    $region7: #{tpu_custom_call.1} parent=1 // pred_check_branch
      %21 = sbr.rel (0) target = $region9
    $region8: #{tpu_custom_call.1} parent=1 // pred_region
      %s23 = ssub.s32 6784, 6784
      %24 = vsyncadd [#allocation6], %s23
      %s25 = sshll.u32 [#allocation5], 4
      %s26 = int_to_ptr.vmem [resolvable:$true] %s25
      %31 = dma.hbm_to_vmem [thread:$0]  %s1, 6784, %s26, [#allocation6], 128, 128, 8
    $region9: #{tpu_custom_call.1} parent=1 // pred_fallthru
      _
    // Predicated region
    $region10: #{tpu_custom_call.1} parent=1 // pred_check
      _
    $region11: #{tpu_custom_call.1} parent=1 // pred_check_branch
      %33 = sbr.rel (0) target = $region13
    $region12: #{tpu_custom_call.1} parent=1 // pred_region
      %34 = dma.done [#allocation3], 128
    $region13: #{tpu_custom_call.1} parent=1 // pred_fallthru
      _
    // Predicated region
    $region14: #{tpu_custom_call.1} parent=1 // pred_check
      _
    $region15: #{tpu_custom_call.1} parent=1 // pred_check_branch
      %36 = sbr.rel (0) target = $region17
    $region16: #{tpu_custom_call.1} parent=1 // pred_region
      %37 = dma.done [#allocation6], 6784
    $region17: #{tpu_custom_call.1} parent=1 // pred_fallthru
      _
    %v38 = vld [vmem:[#allocation2] sm:$0xff]
    %v39 = vld [vmem:[#allocation5] sm:$0x1]
    %v40 = vld [vmem:[#allocation5 + $0x8] sm:$0x1]
    %42 = vset.pattern.permute.xlu0 0
    %43 = vperm.xlu0 %42, %v38
    %v44 = vpop.permute.xlu0 %43
    %v46 = vlaneseq
    %v47 = vshrl.u32 %v46, 7
    %v48 = vsub.s32 0, %v47
    %v49 = vrot.slane %v39, %v48
    %v50 = vmul.f32 %v44, %v49
    %v51 = vlaneseq
    %v52 = vshrl.u32 %v51, 7
    %v53 = vsub.s32 0, %v52
    %v54 = vrot.slane %v40, %v53
    %v55 = vadd.f32 %v50, %v54
    %v56 = vtanh.pop %v55
    %v57 = vld [vmem:[#allocation5 + $0x10] sm:$0xff]
    %v58 = vld [vmem:[#allocation5 + $0x18] sm:$0xff]
    %v59 = vld [vmem:[#allocation5 + $0x20] sm:$0xff]
    %v60 = vld [vmem:[#allocation5 + $0x28] sm:$0xff]
    %v61 = vld [vmem:[#allocation5 + $0x30] sm:$0xff]
    %v62 = vld [vmem:[#allocation5 + $0x38] sm:$0xff]
    %v63 = vld [vmem:[#allocation5 + $0x40] sm:$0xff]
    %v64 = vld [vmem:[#allocation5 + $0x48] sm:$0xff]
    %v65 = vld [vmem:[#allocation5 + $0x50] sm:$0xff]
    %v66 = vld [vmem:[#allocation5 + $0x58] sm:$0xff]
    %v67 = vld [vmem:[#allocation5 + $0x60] sm:$0xff]
    %v68 = vld [vmem:[#allocation5 + $0x68] sm:$0xff]
    %v69 = vld [vmem:[#allocation5 + $0x70] sm:$0xff]
    %v70 = vld [vmem:[#allocation5 + $0x78] sm:$0xff]
    %v71 = vld [vmem:[#allocation5 + $0x80] sm:$0xff]
    %v72 = vld [vmem:[#allocation5 + $0x88] sm:$0xff]
    %v73 = vld [vmem:[#allocation5 + $0x90] sm:$0x1]
    %v74 = vlaneseq
    %v75 = vshrl.u32 %v74, 7
    %v76 = vsub.s32 0, %v75
    %v77 = vrot.slane %v73, %v76
    %78 = vmatprep.subr.mxu0 0.0
    %79 = vmatpush1.msra.mxu0 %v57
    %80 = vmatprep.subr.mxu0 0.0
    %81 = vmatpush1.msra.mxu0 %v58
    %82 = vmatprep.subr.mxu0 0.0
    %83 = vmatpush1.msra.mxu0 %v59
    %84 = vmatprep.subr.mxu0 0.0
    %85 = vmatpush1.msra.mxu0 %v60
    %86 = vmatprep.subr.mxu0 0.0
    %87 = vmatpush1.msra.mxu0 %v61
    %88 = vmatprep.subr.mxu0 0.0
    %89 = vmatpush1.msra.mxu0 %v62
    %90 = vmatprep.subr.mxu0 0.0
    %91 = vmatpush1.msra.mxu0 %v63
    %92 = vmatprep.subr.mxu0 0.0
    %93 = vmatpush1.msra.mxu0 %v64
    %94 = vmatprep.subr.mxu0 0.0
    %95 = vmatpush1.msra.mxu0 %v65
    %96 = vmatprep.subr.mxu0 0.0
    %97 = vmatpush1.msra.mxu0 %v66
    %98 = vmatprep.subr.mxu0 0.0
    %99 = vmatpush1.msra.mxu0 %v67
    %100 = vmatprep.subr.mxu0 0.0
    %101 = vmatpush1.msra.mxu0 %v68
    %102 = vmatprep.subr.mxu0 0.0
    %103 = vmatpush1.msra.mxu0 %v69
    %104 = vmatprep.subr.mxu0 0.0
    %105 = vmatpush1.msra.mxu0 %v70
    %106 = vmatprep.subr.mxu0 0.0
    %107 = vmatpush1.msra.mxu0 %v71
    %108 = vmatprep.subr.mxu0 0.0
    %109 = vmatpush1.msra.mxu0 %v72
    %110 = vmatprep.subr.mxu0 0.0
    %111 = vmatpush1.msra.mxu0 0.0
    %112 = vmatprep.subr.mxu0 0.0
    %113 = vmatpush1.msra.mxu0 0.0
    %114 = vmatprep.subr.mxu0 0.0
    %115 = vmatpush1.msra.mxu0 0.0
    %116 = vmatprep.subr.mxu0 0.0
    %117 = vmatpush1.msra.mxu0 0.0
    %118 = vmatprep.subr.mxu0 0.0
    %119 = vmatpush1.msra.mxu0 0.0
    %120 = vmatprep.subr.mxu0 0.0
    %121 = vmatpush1.msra.mxu0 0.0
    %122 = vmatprep.subr.mxu0 0.0
    %123 = vmatpush1.msra.mxu0 0.0
    %124 = vmatprep.subr.mxu0 0.0
    %125 = vmatpush1.msra.mxu0 0.0
    %126 = vmatprep.subr.mxu0 0.0
    %127 = vmatpush1.msra.mxu0 0.0
    %128 = vmatprep.subr.mxu0 0.0
    %129 = vmatpush1.msra.mxu0 0.0
    %130 = vmatprep.subr.mxu0 0.0
    %131 = vmatpush1.msra.mxu0 0.0
    %132 = vmatprep.subr.mxu0 0.0
    %133 = vmatpush1.msra.mxu0 0.0
    %134 = vmatprep.subr.mxu0 0.0
    %135 = vmatpush1.msra.mxu0 0.0
    %136 = vmatprep.subr.mxu0 0.0
    %137 = vmatpush1.msra.mxu0 0.0
    %138 = vmatprep.subr.mxu0 0.0
    %139 = vmatpush1.msra.mxu0 0.0
    %140 = vmatprep.subr.mxu0 0.0
    %141 = vmatpush1.msra.mxu0 0.0
    %142 = vmatprep.mubr.f32.mxu0 0.0
    %143 = vmatmul.mubr.f32.gmra.mrb[0].mxu0 %v56
    %v144 = vpop.f32.mrb[0].mxu0
    %v145 = vadd.f32 %v77, %v144
    %v146 = vpop.f32.mrb[0].mxu0
    %147 = vdwg.mxu0
    %v148 = vtanh.pop %v145
    %v149 = vld [vmem:[#allocation5 + $0x98] sm:$0xff]
    %v150 = vld [vmem:[#allocation5 + $0xa0] sm:$0xff]
    %v151 = vld [vmem:[#allocation5 + $0xa8] sm:$0xff]
    %v152 = vld [vmem:[#allocation5 + $0xb0] sm:$0xff]
    %v153 = vld [vmem:[#allocation5 + $0xb8] sm:$0xff]
    %v154 = vld [vmem:[#allocation5 + $0xc0] sm:$0xff]
    %v155 = vld [vmem:[#allocation5 + $0xc8] sm:$0xff]
    %v156 = vld [vmem:[#allocation5 + $0xd0] sm:$0xff]
    %v157 = vld [vmem:[#allocation5 + $0xd8] sm:$0xff]
    %v158 = vld [vmem:[#allocation5 + $0xe0] sm:$0xff]
    %v159 = vld [vmem:[#allocation5 + $0xe8] sm:$0xff]
    %v160 = vld [vmem:[#allocation5 + $0xf0] sm:$0xff]
    %v161 = vld [vmem:[#allocation5 + $0xf8] sm:$0xff]
    %v162 = vld [vmem:[#allocation5 + $0x100] sm:$0xff]
    %v163 = vld [vmem:[#allocation5 + $0x108] sm:$0xff]
    %v164 = vld [vmem:[#allocation5 + $0x110] sm:$0xff]
    %v165 = vld [vmem:[#allocation5 + $0x118] sm:$0x1]
    %v166 = vlaneseq
    %v167 = vshrl.u32 %v166, 7
    %v168 = vsub.s32 0, %v167
    %v169 = vrot.slane %v165, %v168
    %170 = vmatprep.subr.mxu0 0.0
    %171 = vmatpush1.msra.mxu0 %v149
    %172 = vmatprep.subr.mxu0 0.0
    %173 = vmatpush1.msra.mxu0 %v150
    %174 = vmatprep.subr.mxu0 0.0
    %175 = vmatpush1.msra.mxu0 %v151
    %176 = vmatprep.subr.mxu0 0.0
    %177 = vmatpush1.msra.mxu0 %v152
    %178 = vmatprep.subr.mxu0 0.0
    %179 = vmatpush1.msra.mxu0 %v153
    %180 = vmatprep.subr.mxu0 0.0
    %181 = vmatpush1.msra.mxu0 %v154
    %182 = vmatprep.subr.mxu0 0.0
    %183 = vmatpush1.msra.mxu0 %v155
    %184 = vmatprep.subr.mxu0 0.0
    %185 = vmatpush1.msra.mxu0 %v156
    %186 = vmatprep.subr.mxu0 0.0
    %187 = vmatpush1.msra.mxu0 %v157
    %188 = vmatprep.subr.mxu0 0.0
    %189 = vmatpush1.msra.mxu0 %v158
    %190 = vmatprep.subr.mxu0 0.0
    %191 = vmatpush1.msra.mxu0 %v159
    %192 = vmatprep.subr.mxu0 0.0
    %193 = vmatpush1.msra.mxu0 %v160
    %194 = vmatprep.subr.mxu0 0.0
    %195 = vmatpush1.msra.mxu0 %v161
    %196 = vmatprep.subr.mxu0 0.0
    %197 = vmatpush1.msra.mxu0 %v162
    %198 = vmatprep.subr.mxu0 0.0
    %199 = vmatpush1.msra.mxu0 %v163
    %200 = vmatprep.subr.mxu0 0.0
    %201 = vmatpush1.msra.mxu0 %v164
    %202 = vmatprep.subr.mxu0 0.0
    %203 = vmatpush1.msra.mxu0 0.0
    %204 = vmatprep.subr.mxu0 0.0
    %205 = vmatpush1.msra.mxu0 0.0
    %206 = vmatprep.subr.mxu0 0.0
    %207 = vmatpush1.msra.mxu0 0.0
    %208 = vmatprep.subr.mxu0 0.0
    %209 = vmatpush1.msra.mxu0 0.0
    %210 = vmatprep.subr.mxu0 0.0
    %211 = vmatpush1.msra.mxu0 0.0
    %212 = vmatprep.subr.mxu0 0.0
    %213 = vmatpush1.msra.mxu0 0.0
    %214 = vmatprep.subr.mxu0 0.0
    %215 = vmatpush1.msra.mxu0 0.0
    %216 = vmatprep.subr.mxu0 0.0
    %217 = vmatpush1.msra.mxu0 0.0
    %218 = vmatprep.subr.mxu0 0.0
    %219 = vmatpush1.msra.mxu0 0.0
    %220 = vmatprep.subr.mxu0 0.0
    %221 = vmatpush1.msra.mxu0 0.0
    %222 = vmatprep.subr.mxu0 0.0
    %223 = vmatpush1.msra.mxu0 0.0
    %224 = vmatprep.subr.mxu0 0.0
    %225 = vmatpush1.msra.mxu0 0.0
    %226 = vmatprep.subr.mxu0 0.0
    %227 = vmatpush1.msra.mxu0 0.0
    %228 = vmatprep.subr.mxu0 0.0
    %229 = vmatpush1.msra.mxu0 0.0
    %230 = vmatprep.subr.mxu0 0.0
    %231 = vmatpush1.msra.mxu0 0.0
    %232 = vmatprep.subr.mxu0 0.0
    %233 = vmatpush1.msra.mxu0 0.0
    %234 = vmatprep.mubr.f32.mxu0 0.0
    %235 = vmatmul.mubr.f32.gmra.mrb[0].mxu0 %v148
    %v236 = vpop.f32.mrb[0].mxu0
    %v237 = vadd.f32 %v169, %v236
    %v238 = vpop.f32.mrb[0].mxu0
    %239 = vdwg.mxu0
    %v240 = vtanh.pop %v237
    %v241 = vld [vmem:[#allocation5 + $0x120] sm:$0xff]
    %v242 = vld [vmem:[#allocation5 + $0x128] sm:$0xff]
    %v243 = vld [vmem:[#allocation5 + $0x130] sm:$0xff]
    %v244 = vld [vmem:[#allocation5 + $0x138] sm:$0xff]
    %v245 = vld [vmem:[#allocation5 + $0x140] sm:$0xff]
    %v246 = vld [vmem:[#allocation5 + $0x148] sm:$0xff]
    %v247 = vld [vmem:[#allocation5 + $0x150] sm:$0xff]
    %v248 = vld [vmem:[#allocation5 + $0x158] sm:$0xff]
    %v249 = vld [vmem:[#allocation5 + $0x160] sm:$0xff]
    %v250 = vld [vmem:[#allocation5 + $0x168] sm:$0xff]
    %v251 = vld [vmem:[#allocation5 + $0x170] sm:$0xff]
    %v252 = vld [vmem:[#allocation5 + $0x178] sm:$0xff]
    %v253 = vld [vmem:[#allocation5 + $0x180] sm:$0xff]
    %v254 = vld [vmem:[#allocation5 + $0x188] sm:$0xff]
    %v255 = vld [vmem:[#allocation5 + $0x190] sm:$0xff]
    %v256 = vld [vmem:[#allocation5 + $0x198] sm:$0xff]
    %v257 = vld [vmem:[#allocation5 + $0x1a0] sm:$0x1]
    %v258 = vlaneseq
    %v259 = vshrl.u32 %v258, 7
    %v260 = vsub.s32 0, %v259
    %v261 = vrot.slane %v257, %v260
    %262 = vmatprep.subr.mxu0 0.0
    %263 = vmatpush1.msra.mxu0 %v241
    %264 = vmatprep.subr.mxu0 0.0
    %265 = vmatpush1.msra.mxu0 %v242
    %266 = vmatprep.subr.mxu0 0.0
    %267 = vmatpush1.msra.mxu0 %v243
    %268 = vmatprep.subr.mxu0 0.0
    %269 = vmatpush1.msra.mxu0 %v244
    %270 = vmatprep.subr.mxu0 0.0
    %271 = vmatpush1.msra.mxu0 %v245
    %272 = vmatprep.subr.mxu0 0.0
    %273 = vmatpush1.msra.mxu0 %v246
    %274 = vmatprep.subr.mxu0 0.0
    %275 = vmatpush1.msra.mxu0 %v247
    %276 = vmatprep.subr.mxu0 0.0
    %277 = vmatpush1.msra.mxu0 %v248
    %278 = vmatprep.subr.mxu0 0.0
    %279 = vmatpush1.msra.mxu0 %v249
    %280 = vmatprep.subr.mxu0 0.0
    %281 = vmatpush1.msra.mxu0 %v250
    %282 = vmatprep.subr.mxu0 0.0
    %283 = vmatpush1.msra.mxu0 %v251
    %284 = vmatprep.subr.mxu0 0.0
    %285 = vmatpush1.msra.mxu0 %v252
    %286 = vmatprep.subr.mxu0 0.0
    %287 = vmatpush1.msra.mxu0 %v253
    %288 = vmatprep.subr.mxu0 0.0
    %289 = vmatpush1.msra.mxu0 %v254
    %290 = vmatprep.subr.mxu0 0.0
    %291 = vmatpush1.msra.mxu0 %v255
    %292 = vmatprep.subr.mxu0 0.0
    %293 = vmatpush1.msra.mxu0 %v256
    %294 = vmatprep.subr.mxu0 0.0
    %295 = vmatpush1.msra.mxu0 0.0
    %296 = vmatprep.subr.mxu0 0.0
    %297 = vmatpush1.msra.mxu0 0.0
    %298 = vmatprep.subr.mxu0 0.0
    %299 = vmatpush1.msra.mxu0 0.0
    %300 = vmatprep.subr.mxu0 0.0
    %301 = vmatpush1.msra.mxu0 0.0
    %302 = vmatprep.subr.mxu0 0.0
    %303 = vmatpush1.msra.mxu0 0.0
    %304 = vmatprep.subr.mxu0 0.0
    %305 = vmatpush1.msra.mxu0 0.0
    %306 = vmatprep.subr.mxu0 0.0
    %307 = vmatpush1.msra.mxu0 0.0
    %308 = vmatprep.subr.mxu0 0.0
    %309 = vmatpush1.msra.mxu0 0.0
    %310 = vmatprep.subr.mxu0 0.0
    %311 = vmatpush1.msra.mxu0 0.0
    %312 = vmatprep.subr.mxu0 0.0
    %313 = vmatpush1.msra.mxu0 0.0
    %314 = vmatprep.subr.mxu0 0.0
    %315 = vmatpush1.msra.mxu0 0.0
    %316 = vmatprep.subr.mxu0 0.0
    %317 = vmatpush1.msra.mxu0 0.0
    %318 = vmatprep.subr.mxu0 0.0
    %319 = vmatpush1.msra.mxu0 0.0
    %320 = vmatprep.subr.mxu0 0.0
    %321 = vmatpush1.msra.mxu0 0.0
    %322 = vmatprep.subr.mxu0 0.0
    %323 = vmatpush1.msra.mxu0 0.0
    %324 = vmatprep.subr.mxu0 0.0
    %325 = vmatpush1.msra.mxu0 0.0
    %326 = vmatprep.mubr.f32.mxu0 0.0
    %327 = vmatmul.mubr.f32.gmra.mrb[0].mxu0 %v240
    %v328 = vpop.f32.mrb[0].mxu0
    %v329 = vadd.f32 %v261, %v328
    %v330 = vpop.f32.mrb[0].mxu0
    %331 = vdwg.mxu0
    %vm332 = vcmask 23552
    %333 = vst.msk [vmem:[#allocation7] sm:$0xff] %vm332, %v329
    // Predicated region
    $region18: #{tpu_custom_call.1} parent=1 // pred_check
      _
    $region19: #{tpu_custom_call.1} parent=1 // pred_check_branch
      %335 = sbr.rel (0) target = $region21
    $region20: #{tpu_custom_call.1} parent=1 // pred_region
      %s337 = ssub.s32 128, 128
      %338 = vsyncadd [#allocation4], %s337
      %s340 = sshll.u32 [#allocation7], 4
      %s341 = int_to_ptr.vmem [resolvable:$true] %s340
      %343 = dma.vmem_to_hbm [thread:$0]  %s341, 128, %s2, [#allocation4]
    $region21: #{tpu_custom_call.1} parent=1 // pred_fallthru
      _
    // Predicated region
    $region22: #{tpu_custom_call.1} parent=1 // pred_check
      _
    $region23: #{tpu_custom_call.1} parent=1 // pred_check_branch
      %345 = sbr.rel (0) target = $region25
    $region24: #{tpu_custom_call.1} parent=1 // pred_region
      %346 = dma.done [#allocation4], 128
    $region25: #{tpu_custom_call.1} parent=1 // pred_fallthru
      _
    %347 = vsyncpa [#allocation3], 1
    %348 = vsyncpa [#allocation6], 1
    %349 = vsyncpa [#allocation4], 1

</llo_original>
